<compile_context>
chip_gen: v6e
topology: v6e:2x2x1
jax: 0.10.0
libtpu: 0.0.40
codegen_flags: <defaults>
</compile_context>

<pallas_src>
import functools

import jax
import jax.numpy as jnp
from jax.experimental import pallas as pl
from jax.experimental.pallas import tpu as pltpu


LANE = 128                       # lane padding for feature / hidden / class axes
SMALL_N_MAX = 1024               # fused single-kernel path if n_pad <= this
SMALL_F_MAX = 2048               # ... and f_pad <= this (bounds VMEM usage)
VMEM_LIMIT = 32 * 1024 * 1024    # safe scoped-VMEM limit on v5e / v6e / v7x


def _round_up(x, m):
    return ((x + m - 1) // m) * m


def _pick_pow2_tile(limit):
    """Largest power-of-two multiple of 128 that is <= limit (min 128)."""
    t = 128
    while t * 2 <= limit:
        t *= 2
    return t


def _plan(n, f_pad, force_tiled=False):
    """Static padding / tiling plan. Returns (mode, n_pad, tile_m, tile_k)."""
    n16 = _round_up(n, 16)                             # bf16 sublane pack
    if (not force_tiled) and n16 <= SMALL_N_MAX and f_pad <= SMALL_F_MAX:
        return "small", n16, None, None
    n128 = _round_up(n, 128)
    tile_k = _pick_pow2_tile(min(512, n128))
    tile_m = _pick_pow2_tile(min(512, max(128, n128 // 2)))  # >=2 row blocks
    n_pad = _round_up(n, max(tile_m, tile_k))
    return "tiled", n_pad, tile_m, tile_k


# ---------------------------------------------------------------------------
# Small-graph path: whole forward in ONE kernel, A_hat resident in VMEM.
# ---------------------------------------------------------------------------
def _fused_small_kernel(a_ref, x_ref, w1_ref, b1_ref, w2_ref, b2_ref, out_ref,
                        *, num_classes):
    xw1 = jnp.dot(x_ref[...], w1_ref[...], preferred_element_type=jnp.float32)
    axw1 = jnp.dot(a_ref[...], xw1.astype(jnp.bfloat16),
                   preferred_element_type=jnp.float32)
    h = jnp.maximum(axw1 + b1_ref[...], 0.0)
    # TODO(synk): F.dropout(training=True) uses torch RNG; implemented as
    # identity (eval-mode semantics) to keep the kernel deterministic.
    hw2 = jnp.dot(h.astype(jnp.bfloat16), w2_ref[...],
                  preferred_element_type=jnp.float32)
    z = jnp.dot(a_ref[...], hw2.astype(jnp.bfloat16),
                preferred_element_type=jnp.float32) + b2_ref[...]
    lane = jax.lax.broadcasted_iota(jnp.int32, z.shape, 1)
    valid = lane < num_classes
    zm = jnp.where(valid, z, -jnp.inf)                 # mask padded class lanes
    m = jnp.max(zm, axis=1, keepdims=True)
    s = jnp.sum(jnp.exp(zm - m), axis=1, keepdims=True)
    out_ref[...] = z - (m + jnp.log(s))


# ---------------------------------------------------------------------------
# Tiled path, stage A: HW2 = relu(A_hat @ (X @ W1) + b1) @ W2
#   grid = (row blocks, K blocks); X@W1 computed on the fly per K block;
#   f32 VMEM accumulator, bias + ReLU + W2 transform at the last K step.
# ---------------------------------------------------------------------------
def _agg1_fused_kernel(a_ref, x_ref, w1_ref, b1_ref, w2_ref, out_ref, acc_ref):
    @pl.when(pl.program_id(1) == 0)
    def _():
        acc_ref[...] = jnp.zeros_like(acc_ref)

    xw_k = jnp.dot(x_ref[...], w1_ref[...], preferred_element_type=jnp.float32)
    acc_ref[...] += jnp.dot(a_ref[...], xw_k.astype(jnp.bfloat16),
                            preferred_element_type=jnp.float32)

    @pl.when(pl.program_id(1) == pl.num_programs(1) - 1)
    def _():
        h = jnp.maximum(acc_ref[...] + b1_ref[...], 0.0)
        # TODO(synk): dropout is identity (eval-mode semantics), see above.
        out_ref[...] = jnp.dot(
            h.astype(w2_ref.dtype), w2_ref[...],
            preferred_element_type=jnp.float32).astype(out_ref.dtype)


# ---------------------------------------------------------------------------
# Tiled path, stage B: out = log_softmax(A_hat @ HW2 + b2), padded lanes masked
# ---------------------------------------------------------------------------
def _agg2_kernel(a_ref, hw_ref, b2_ref, out_ref, acc_ref, *, num_classes):
    @pl.when(pl.program_id(1) == 0)
    def _():
        acc_ref[...] = jnp.zeros_like(acc_ref)

    acc_ref[...] += jnp.dot(a_ref[...], hw_ref[...],
                            preferred_element_type=jnp.float32)

    @pl.when(pl.program_id(1) == pl.num_programs(1) - 1)
    def _():
        z = acc_ref[...] + b2_ref[...]
        lane = jax.lax.broadcasted_iota(jnp.int32, z.shape, 1)
        valid = lane < num_classes
        zm = jnp.where(valid, z, -jnp.inf)
        m = jnp.max(zm, axis=1, keepdims=True)
        s = jnp.sum(jnp.exp(zm - m), axis=1, keepdims=True)
        out_ref[...] = z - (m + jnp.log(s))


# ---------------------------------------------------------------------------
# Padding (do this ONCE outside the per-call jit path for repeated inference).
# ---------------------------------------------------------------------------
def pad_gcn_inputs(a_hat, x, w1, b1, w2, b2, force_tiled=False):
    n, f = x.shape
    h = w1.shape[1]
    c = w2.shape[1]
    f_pad = _round_up(f, LANE)
    h_pad = _round_up(h, LANE)
    c_pad = _round_up(c, LANE)
    _, n_pad, _, _ = _plan(n, f_pad, force_tiled)

    a_p = jnp.zeros((n_pad, n_pad), jnp.bfloat16).at[:n, :n].set(
        a_hat.astype(jnp.bfloat16))
    x_p = jnp.zeros((n_pad, f_pad), jnp.bfloat16).at[:n, :f].set(
        x.astype(jnp.bfloat16))
    w1_p = jnp.zeros((f_pad, h_pad), jnp.bfloat16).at[:f, :h].set(
        w1.astype(jnp.bfloat16))
    b1_p = jnp.zeros((1, h_pad), jnp.float32).at[:, :h].set(
        jnp.reshape(b1, (1, -1)).astype(jnp.float32))
    w2_p = jnp.zeros((h_pad, c_pad), jnp.bfloat16).at[:h, :c].set(
        w2.astype(jnp.bfloat16))
    b2_p = jnp.zeros((1, c_pad), jnp.float32).at[:, :c].set(
        jnp.reshape(b2, (1, -1)).astype(jnp.float32))
    return a_p, x_p, w1_p, b1_p, w2_p, b2_p


# ---------------------------------------------------------------------------
# Forward on pre-padded inputs.
# ---------------------------------------------------------------------------
def gcn_forward_padded(a_p, x_p, w1_p, b1_p, w2_p, b2_p, *, num_nodes,
                       num_classes, force_tiled=False):
    n_pad_in = a_p.shape[0]
    f_pad = x_p.shape[1]
    h_pad = w1_p.shape[1]
    c_pad = w2_p.shape[1]
    mode, n_pad, tile_m, tile_k = _plan(num_nodes, f_pad, force_tiled)
    assert n_pad == n_pad_in, "padded inputs inconsistent; use pad_gcn_inputs"

    if mode == "small":
        # One fused kernel; A_hat resident in VMEM, no HBM intermediates.
        out_pad = pl.pallas_call(
            functools.partial(_fused_small_kernel, num_classes=num_classes),
            out_shape=jax.ShapeDtypeStruct((n_pad, c_pad), jnp.float32),
            compiler_params=pltpu.CompilerParams(vmem_limit_bytes=VMEM_LIMIT),
            cost_estimate=pl.CostEstimate(
                flops=2 * (n_pad * f_pad * h_pad + n_pad * n_pad * h_pad
                           + n_pad * h_pad * c_pad + n_pad * n_pad * c_pad),
                transcendentals=n_pad * c_pad,
                bytes_accessed=2 * (n_pad * n_pad + n_pad * f_pad
                                    + f_pad * h_pad + h_pad * c_pad)
                               + 4 * (h_pad + c_pad + n_pad * c_pad)),
        )(a_p, x_p, w1_p, b1_p, w2_p, b2_p)
        return out_pad[:num_nodes, :num_classes]

    # Tiled / streamed path for large graphs.
    grid_m = n_pad // tile_m
    grid_k = n_pad // tile_k

    hw2 = pl.pallas_call(
        _agg1_fused_kernel,
        out_shape=jax.ShapeDtypeStruct((n_pad, c_pad), jnp.bfloat16),
        grid=(grid_m, grid_k),
        in_specs=[
            pl.BlockSpec((tile_m, tile_k), lambda i, k: (i, k)),
            pl.BlockSpec((tile_k, f_pad), lambda i, k: (k, 0)),
            pl.BlockSpec((f_pad, h_pad), lambda i, k: (0, 0)),   # W1 resident
            pl.BlockSpec((1, h_pad), lambda i, k: (0, 0)),       # b1 resident
            pl.BlockSpec((h_pad, c_pad), lambda i, k: (0, 0)),   # W2 resident
        ],
        out_specs=pl.BlockSpec((tile_m, c_pad), lambda i, k: (i, 0)),
        scratch_shapes=[pltpu.VMEM((tile_m, h_pad), jnp.float32)],
        compiler_params=pltpu.CompilerParams(
            dimension_semantics=("parallel", "arbitrary"),
            vmem_limit_bytes=VMEM_LIMIT),
        cost_estimate=pl.CostEstimate(
            flops=2 * (grid_m * n_pad * f_pad * h_pad
                       + n_pad * n_pad * h_pad + n_pad * h_pad * c_pad),
            transcendentals=0,
            bytes_accessed=2 * (n_pad * n_pad + grid_m * n_pad * f_pad
                                + f_pad * h_pad + h_pad * c_pad
                                + n_pad * c_pad)),
    )(a_p, x_p, w1_p, b1_p, w2_p)

    out_pad = pl.pallas_call(
        functools.partial(_agg2_kernel, num_classes=num_classes),
        out_shape=jax.ShapeDtypeStruct((n_pad, c_pad), jnp.float32),
        grid=(grid_m, grid_k),
        in_specs=[
            pl.BlockSpec((tile_m, tile_k), lambda i, k: (i, k)),
            pl.BlockSpec((tile_k, c_pad), lambda i, k: (k, 0)),
            pl.BlockSpec((1, c_pad), lambda i, k: (0, 0)),       # b2 resident
        ],
        out_specs=pl.BlockSpec((tile_m, c_pad), lambda i, k: (i, 0)),
        scratch_shapes=[pltpu.VMEM((tile_m, c_pad), jnp.float32)],
        compiler_params=pltpu.CompilerParams(
            dimension_semantics=("parallel", "arbitrary"),
            vmem_limit_bytes=VMEM_LIMIT),
        cost_estimate=pl.CostEstimate(
            flops=2 * n_pad * n_pad * c_pad,
            transcendentals=n_pad * c_pad,
            bytes_accessed=2 * (n_pad * n_pad + grid_m * n_pad * c_pad)
                           + 4 * n_pad * c_pad),
    )(a_p, hw2, b2_p)

    return out_pad[:num_nodes, :num_classes]


def gcn_forward(a_hat, x, w1, b1, w2, b2, force_tiled=False):
    """Convenience wrapper: pad + forward (pad once externally when looping)."""
    padded = pad_gcn_inputs(a_hat, x, w1, b1, w2, b2, force_tiled)
    return gcn_forward_padded(*padded, num_nodes=x.shape[0],
                              num_classes=w2.shape[1], force_tiled=force_tiled)


def build_norm_adj(edge_index, num_nodes):
    """Dense D^-1/2 (A + I) D^-1/2 from a (2, E) edge_index (PyG gcn_norm)."""
    src = edge_index[0]
    dst = edge_index[1]
    a = jnp.zeros((num_nodes, num_nodes), jnp.float32)
    a = a.at[dst, src].add(1.0)                     # aggregate src -> dst
    a = a + jnp.eye(num_nodes, dtype=jnp.float32)   # self loops
    deg = jnp.sum(a, axis=1)
    d_inv_sqrt = jnp.where(deg > 0, 1.0 / jnp.sqrt(deg), 0.0)
    return d_inv_sqrt[:, None] * a * d_inv_sqrt[None, :]


def _reference(a_hat, x, w1, b1, w2, b2):
    h = jnp.maximum(a_hat @ (x @ w1) + jnp.reshape(b1, (1, -1)), 0.0)
    z = a_hat @ (h @ w2) + jnp.reshape(b2, (1, -1))
    return jax.nn.log_softmax(z, axis=1)


if __name__ == "__main__":
    key = jax.random.PRNGKey(0)
    num_nodes = 8
    num_node_features = 32
    hidden = 16
    num_classes = 4

    # Small undirected graph, edges stored in both directions (PyG convention).
    undirected = [(0, 1), (1, 2), (2, 3), (3, 4), (4, 5), (5, 6), (6, 7),
                  (0, 7), (2, 5)]
    src = [u for (u, v) in undirected] + [v for (u, v) in undirected]
    dst = [v for (u, v) in undirected] + [u for (u, v) in undirected]
    edge_index = jnp.array([src, dst], dtype=jnp.int32)     # (2, E)

    k_x, k_w1, k_b1, k_w2, k_b2, k_x2, k_e1, k_e2 = jax.random.split(key, 8)
    x = jax.random.normal(k_x, (num_nodes, num_node_features), jnp.float32)
    w1 = jax.random.normal(k_w1, (num_node_features, hidden), jnp.float32) * 0.1
    b1 = jax.random.normal(k_b1, (1, hidden), jnp.float32) * 0.1
    w2 = jax.random.normal(k_w2, (hidden, num_classes), jnp.float32) * 0.1
    b2 = jax.random.normal(k_b2, (1, num_classes), jnp.float32) * 0.1

    a_hat = build_norm_adj(edge_index, num_nodes)

    # ---- main run: small-graph fused path (pad once, jit the padded fwd) ----
    padded = pad_gcn_inputs(a_hat, x, w1, b1, w2, b2)
    fwd = jax.jit(functools.partial(
        gcn_forward_padded, num_nodes=num_nodes, num_classes=num_classes))
    out = jax.block_until_ready(fwd(*padded))

    ref = _reference(a_hat, x, w1, b1, w2, b2)
    assert out.shape == (num_nodes, num_classes)
    row_sums = jnp.sum(jnp.exp(out), axis=1)
    assert bool(jnp.allclose(row_sums, 1.0, atol=1e-4))          # valid log-probs
    assert bool(jnp.allclose(out, ref, atol=5e-2, rtol=5e-2))    # bf16 tolerance

    # ---- secondary check: streamed/tiled path on a slightly larger graph ----
    n2 = 200
    x2 = jax.random.normal(k_x2, (n2, num_node_features), jnp.float32)
    src2 = jax.random.randint(k_e1, (600,), 0, n2)
    dst2 = jax.random.randint(k_e2, (600,), 0, n2)
    edge_index2 = jnp.stack([jnp.concatenate([src2, dst2]),
                             jnp.concatenate([dst2, src2])]).astype(jnp.int32)
    a_hat2 = build_norm_adj(edge_index2, n2)

    padded2 = pad_gcn_inputs(a_hat2, x2, w1, b1, w2, b2, force_tiled=True)
    fwd2 = jax.jit(functools.partial(
        gcn_forward_padded, num_nodes=n2, num_classes=num_classes,
        force_tiled=True))
    out2 = jax.block_until_ready(fwd2(*padded2))
    ref2 = _reference(a_hat2, x2, w1, b1, w2, b2)
    assert out2.shape == (n2, num_classes)
    assert bool(jnp.allclose(out2, ref2, atol=5e-2, rtol=5e-2))

    print("KERNEL_OK")
</pallas_src>

<mosaic_0001>
module attributes {stable_mosaic.version = 11 : i64} {
  func.func @_fused_small_kernel(%arg0: memref<16x16xbf16, #tpu.memory_space<vmem>>, %arg1: memref<16x128xbf16, #tpu.memory_space<vmem>>, %arg2: memref<128x128xbf16, #tpu.memory_space<vmem>>, %arg3: memref<1x128xf32, #tpu.memory_space<vmem>>, %arg4: memref<128x128xbf16, #tpu.memory_space<vmem>>, %arg5: memref<1x128xf32, #tpu.memory_space<vmem>>, %arg6: memref<16x128xf32, #tpu.memory_space<vmem>>) attributes {dimension_semantics = [], scalar_prefetch = 0 : i64, scratch_operands = 0 : i64, tpu.core_type = #tpu.core_type<tc>} {
    %c0 = arith.constant 0 : index
    %c0_0 = arith.constant 0 : index
    %0 = vector.load %arg1[%c0, %c0_0] : memref<16x128xbf16, #tpu.memory_space<vmem>>, vector<16x128xbf16>
    %c0_1 = arith.constant 0 : index
    %c0_2 = arith.constant 0 : index
    %1 = vector.load %arg2[%c0_1, %c0_2] : memref<128x128xbf16, #tpu.memory_space<vmem>>, vector<128x128xbf16>
    %cst = arith.constant dense<0.000000e+00> : vector<16x128xf32>
    %2 = tpu.matmul %0, %1, %cst {dimension_numbers = #tpu.dot_dimension_numbers<[1], [0], [0], [1], [0, 0, 1, 1], [], []>} : vector<16x128xbf16>, vector<128x128xbf16>, vector<16x128xf32> -> vector<16x128xf32>
    %c0_3 = arith.constant 0 : index
    %c0_4 = arith.constant 0 : index
    %3 = vector.load %arg0[%c0_3, %c0_4] : memref<16x16xbf16, #tpu.memory_space<vmem>>, vector<16x16xbf16>
    %4 = arith.truncf %2 : vector<16x128xf32> to vector<16x128xbf16>
    %cst_5 = arith.constant dense<0.000000e+00> : vector<16x128xf32>
    %5 = tpu.matmul %3, %4, %cst_5 {dimension_numbers = #tpu.dot_dimension_numbers<[1], [0], [0], [1], [0, 0, 1, 1], [], []>} : vector<16x16xbf16>, vector<16x128xbf16>, vector<16x128xf32> -> vector<16x128xf32>
    %c0_6 = arith.constant 0 : index
    %c0_7 = arith.constant 0 : index
    %6 = vector.load %arg3[%c0_6, %c0_7] : memref<1x128xf32, #tpu.memory_space<vmem>>, vector<1x128xf32>
    %7 = vector.broadcast %6 : vector<1x128xf32> to vector<16x128xf32>
    %8 = arith.addf %5, %7 : vector<16x128xf32>
    %cst_8 = arith.constant 0.000000e+00 : f32
    %9 = vector.broadcast %cst_8 : f32 to vector<16x128xf32>
    %10 = arith.maximumf %8, %9 : vector<16x128xf32>
    %11 = arith.truncf %10 : vector<16x128xf32> to vector<16x128xbf16>
    %c0_9 = arith.constant 0 : index
    %c0_10 = arith.constant 0 : index
    %12 = vector.load %arg4[%c0_9, %c0_10] : memref<128x128xbf16, #tpu.memory_space<vmem>>, vector<128x128xbf16>
    %cst_11 = arith.constant dense<0.000000e+00> : vector<16x128xf32>
    %13 = tpu.matmul %11, %12, %cst_11 {dimension_numbers = #tpu.dot_dimension_numbers<[1], [0], [0], [1], [0, 0, 1, 1], [], []>} : vector<16x128xbf16>, vector<128x128xbf16>, vector<16x128xf32> -> vector<16x128xf32>
    %c0_12 = arith.constant 0 : index
    %c0_13 = arith.constant 0 : index
    %14 = vector.load %arg0[%c0_12, %c0_13] : memref<16x16xbf16, #tpu.memory_space<vmem>>, vector<16x16xbf16>
    %15 = arith.truncf %13 : vector<16x128xf32> to vector<16x128xbf16>
    %cst_14 = arith.constant dense<0.000000e+00> : vector<16x128xf32>
    %16 = tpu.matmul %14, %15, %cst_14 {dimension_numbers = #tpu.dot_dimension_numbers<[1], [0], [0], [1], [0, 0, 1, 1], [], []>} : vector<16x16xbf16>, vector<16x128xbf16>, vector<16x128xf32> -> vector<16x128xf32>
    %c0_15 = arith.constant 0 : index
    %c0_16 = arith.constant 0 : index
    %17 = vector.load %arg5[%c0_15, %c0_16] : memref<1x128xf32, #tpu.memory_space<vmem>>, vector<1x128xf32>
    %18 = vector.broadcast %17 : vector<1x128xf32> to vector<16x128xf32>
    %19 = arith.addf %16, %18 : vector<16x128xf32>
    %20 = tpu.iota {dimensions = array<i32: 1>} : vector<16x128xi32>
    %c4_i32 = arith.constant 4 : i32
    %21 = vector.broadcast %c4_i32 : i32 to vector<16x128xi32>
    %22 = arith.cmpi slt, %20, %21 : vector<16x128xi32>
    %cst_17 = arith.constant 0xFF800000 : f32
    %23 = vector.broadcast %cst_17 : f32 to vector<16x128xf32>
    %24 = arith.select %22, %19, %23 : vector<16x128xi1>, vector<16x128xf32>
    %cst_18 = arith.constant dense<0xFF800000> : vector<16xf32>
    %25 = vector.multi_reduction <maximumf>, %24, %cst_18 [1] : vector<16x128xf32> to vector<16xf32>
    %26 = vector.shape_cast %25 : vector<16xf32> to vector<16x1xf32>
    %27 = vector.broadcast %26 : vector<16x1xf32> to vector<16x128xf32>
    %28 = arith.subf %24, %27 : vector<16x128xf32>
    %29 = math.exp %28 : vector<16x128xf32>
    %cst_19 = arith.constant dense<0.000000e+00> : vector<16xf32>
    %30 = vector.multi_reduction <add>, %29, %cst_19 [1] : vector<16x128xf32> to vector<16xf32>
    %31 = vector.shape_cast %30 : vector<16xf32> to vector<16x1xf32>
    %32 = math.log %31 : vector<16x1xf32>
    %33 = arith.addf %26, %32 : vector<16x1xf32>
    %34 = vector.broadcast %33 : vector<16x1xf32> to vector<16x128xf32>
    %35 = arith.subf %19, %34 : vector<16x128xf32>
    %c0_20 = arith.constant 0 : index
    %c0_21 = arith.constant 0 : index
    %36 = vector.load %arg6[%c0_20, %c0_21] : memref<16x128xf32, #tpu.memory_space<vmem>>, vector<16x128xf32>
    tpu.vector_store %arg6[%c0_20, %c0_21], %35 {strides = array<i32>} : memref<16x128xf32, #tpu.memory_space<vmem>>, vector<16x128xf32>,
    return
  }
}

</mosaic_0001>

<llo_original>
// kernel: gcn_forward_padded.1
$region0: #{gcn_forward_padded.1}
  #allocation0 [shape = 'u32[]', space=smem, size = 0x4, offset = 0x4, fixed_abs, tag = 'smem constant byte address 0x4 - core index']
  #allocation1 [shape = 'u32[144,128]{1,0:T(1,128)}', space=vmem, size = 0x12000, scoped, tag = 'internal scratch']
  %s0 = inlined_call_operand.hbm [shape: bf16[16,16], index: 0, kind: input, shape index: {}]
  %s1 = inlined_call_operand.hbm [shape: bf16[16,128], index: 1, kind: input, shape index: {}]
  %s2 = inlined_call_operand.hbm [shape: bf16[128,128], index: 2, kind: input, shape index: {}]
  %s3 = inlined_call_operand.vmem [shape: f32[1,128], index: 3, kind: input, shape index: {}]
  %s4 = inlined_call_operand.hbm [shape: bf16[128,128], index: 4, kind: input, shape index: {}]
  %s5 = inlined_call_operand.vmem [shape: f32[1,128], index: 5, kind: input, shape index: {}]
  %s6 = inlined_call_operand.vmem [shape: f32[16,128], index: 6, kind: output, shape index: {}]
  %s7 = sld [smem:[#allocation0]]
  $region50: #{gcn_forward_padded.1} parent=0
    _
  %s9 = ssub.s32 1, %s7
  %s10 = scalar_select 0, %s9, %s7
  $region1: #{gcn_forward_padded.1} parent=0
    #allocation2 [shape = 'u8[4096]{0}', space=vmem, size = 0x1000, scoped, tag = 'input window, operand 0, single buffered']
    #allocation3 [shape = 's32[1]{0}', space=sflag, size = 0x4, scoped, tag = 'scoped memory for gcn_forward_padded.1']
    #allocation4 [shape = 'u8[4096]{0}', space=vmem, size = 0x1000, scoped, tag = 'input window, operand 1, single buffered']
    #allocation5 [shape = 's32[1]{0}', space=sflag, size = 0x4, scoped, tag = 'scoped memory for gcn_forward_padded.1']
    #allocation6 [shape = 'u8[32768]{0}', space=vmem, size = 0x8000, scoped, tag = 'input window, operand 2, single buffered']
    #allocation7 [shape = 'u8[32768]{0}', space=vmem, size = 0x8000, scoped, tag = 'input window, operand 4, single buffered']
    #allocation8 [shape = 's32[1]{0}', space=sflag, size = 0x4, scoped, tag = 'scoped memory for gcn_forward_padded.1']
    %11 = vsyncpa [#allocation3], 0
    %12 = vsyncpa [#allocation5], 0
    %13 = vsyncpa [#allocation8], 0
    // Predicated region
    $region2: #{gcn_forward_padded.1} parent=1 // pred_check
      _
    $region3: #{gcn_forward_padded.1} parent=1 // pred_check_branch
      %15 = sbr.rel (0) target = $region5
    $region4: #{gcn_forward_padded.1} parent=1 // pred_region
      %s17 = ssub.s32 128, 128
      %18 = vsyncadd [#allocation3], %s17
      %s19 = sshll.u32 [#allocation2], 4
      %s20 = int_to_ptr.vmem [resolvable:$true] %s19
      %25 = dma.hbm_to_vmem [thread:$0]  %s0, 128, %s20, [#allocation3], 64, 64, 4
    $region5: #{gcn_forward_padded.1} parent=1 // pred_fallthru
      _
    // Predicated region
    $region6: #{gcn_forward_padded.1} parent=1 // pred_check
      _
    $region7: #{gcn_forward_padded.1} parent=1 // pred_check_branch
      %27 = sbr.rel (0) target = $region9
    $region8: #{gcn_forward_padded.1} parent=1 // pred_region
      %s29 = ssub.s32 128, 128
      %30 = vsyncadd [#allocation5], %s29
      %s31 = sshll.u32 [#allocation4], 4
      %s32 = int_to_ptr.vmem [resolvable:$true] %s31
      %37 = dma.hbm_to_vmem [thread:$0]  %s1, 128, %s32, [#allocation5], 64, 64, 4
    $region9: #{gcn_forward_padded.1} parent=1 // pred_fallthru
      _
    // Predicated region
    $region10: #{gcn_forward_padded.1} parent=1 // pred_check
      _
    $region11: #{gcn_forward_padded.1} parent=1 // pred_check_branch
      %39 = sbr.rel (0) target = $region13
    $region12: #{gcn_forward_padded.1} parent=1 // pred_region
      %s41 = ssub.s32 1024, 1024
      %42 = vsyncadd [#allocation5], %s41
      %s43 = sshll.u32 [#allocation6], 4
      %s44 = int_to_ptr.vmem [resolvable:$true] %s43
      %49 = dma.hbm_to_vmem [thread:$0]  %s2, 1024, %s44, [#allocation5], 64, 64, 4
    $region13: #{gcn_forward_padded.1} parent=1 // pred_fallthru
      _
    // Predicated region
    $region14: #{gcn_forward_padded.1} parent=1 // pred_check
      _
    $region15: #{gcn_forward_padded.1} parent=1 // pred_check_branch
      %51 = sbr.rel (0) target = $region17
    $region16: #{gcn_forward_padded.1} parent=1 // pred_region
      _
    $region17: #{gcn_forward_padded.1} parent=1 // pred_fallthru
      _
    // Predicated region
    $region18: #{gcn_forward_padded.1} parent=1 // pred_check
      _
    $region19: #{gcn_forward_padded.1} parent=1 // pred_check_branch
      %53 = sbr.rel (0) target = $region21
    $region20: #{gcn_forward_padded.1} parent=1 // pred_region
      %s55 = ssub.s32 1024, 1024
      %56 = vsyncadd [#allocation8], %s55
      %s57 = sshll.u32 [#allocation7], 4
      %s58 = int_to_ptr.vmem [resolvable:$true] %s57
      %63 = dma.hbm_to_vmem [thread:$0]  %s4, 1024, %s58, [#allocation8], 64, 64, 4
    $region21: #{gcn_forward_padded.1} parent=1 // pred_fallthru
      _
    // Predicated region
    $region22: #{gcn_forward_padded.1} parent=1 // pred_check
      _
    $region23: #{gcn_forward_padded.1} parent=1 // pred_check_branch
      %65 = sbr.rel (0) target = $region25
    $region24: #{gcn_forward_padded.1} parent=1 // pred_region
      _
    $region25: #{gcn_forward_padded.1} parent=1 // pred_fallthru
      _
    // Predicated region
    $region26: #{gcn_forward_padded.1} parent=1 // pred_check
      _
    $region27: #{gcn_forward_padded.1} parent=1 // pred_check_branch
      %67 = sbr.rel (0) target = $region29
    $region28: #{gcn_forward_padded.1} parent=1 // pred_region
      %68 = dma.done [#allocation3], 128
    $region29: #{gcn_forward_padded.1} parent=1 // pred_fallthru
      _
    // Predicated region
    $region30: #{gcn_forward_padded.1} parent=1 // pred_check
      _
    $region31: #{gcn_forward_padded.1} parent=1 // pred_check_branch
      %70 = sbr.rel (0) target = $region33
    $region32: #{gcn_forward_padded.1} parent=1 // pred_region
      %71 = dma.done [#allocation5], 128
    $region33: #{gcn_forward_padded.1} parent=1 // pred_fallthru
      _
    // Predicated region
    $region34: #{gcn_forward_padded.1} parent=1 // pred_check
      _
    $region35: #{gcn_forward_padded.1} parent=1 // pred_check_branch
      %73 = sbr.rel (0) target = $region37
    $region36: #{gcn_forward_padded.1} parent=1 // pred_region
      %74 = dma.done [#allocation5], 1024
    $region37: #{gcn_forward_padded.1} parent=1 // pred_fallthru
      _
    // Predicated region
    $region38: #{gcn_forward_padded.1} parent=1 // pred_check
      _
    $region39: #{gcn_forward_padded.1} parent=1 // pred_check_branch
      %76 = sbr.rel (0) target = $region41
    $region40: #{gcn_forward_padded.1} parent=1 // pred_region
      %77 = dma.done [#allocation8], 1024
    $region41: #{gcn_forward_padded.1} parent=1 // pred_fallthru
      _
    %v79 = vld [vmem:[#allocation4] sm:$0xf]
    %v80 = vld [vmem:[#allocation4 + $0x4] sm:$0xf]
    %v81 = vld [vmem:[#allocation6] sm:$0xf]
    %v82 = vld [vmem:[#allocation6 + $0x4] sm:$0xf]
    %v83 = vld [vmem:[#allocation6 + $0x8] sm:$0xf]
    %v84 = vld [vmem:[#allocation6 + $0xc] sm:$0xf]
    %v85 = vld [vmem:[#allocation6 + $0x10] sm:$0xf]
    %v86 = vld [vmem:[#allocation6 + $0x14] sm:$0xf]
    %v87 = vld [vmem:[#allocation6 + $0x18] sm:$0xf]
    %v88 = vld [vmem:[#allocation6 + $0x1c] sm:$0xf]
    %v89 = vld [vmem:[#allocation6 + $0x20] sm:$0xf]
    %v90 = vld [vmem:[#allocation6 + $0x24] sm:$0xf]
    %v91 = vld [vmem:[#allocation6 + $0x28] sm:$0xf]
    %v92 = vld [vmem:[#allocation6 + $0x2c] sm:$0xf]
    %v93 = vld [vmem:[#allocation6 + $0x30] sm:$0xf]
    %v94 = vld [vmem:[#allocation6 + $0x34] sm:$0xf]
    %v95 = vld [vmem:[#allocation6 + $0x38] sm:$0xf]
    %v96 = vld [vmem:[#allocation6 + $0x3c] sm:$0xf]
    %v99 = vunpack.c.l.b16 %v79
    %v100 = vunpack.c.l.b16 %v80
    %v101 = vpack.c.b16 %v100, %v99
    %v119 = vunpack.c.l.b16 %v81
    %v120 = vunpack.c.l.b16 %v82
    %v121 = vunpack.c.l.b16 %v83
    %v122 = vunpack.c.l.b16 %v84
    %v123 = vunpack.c.l.b16 %v85
    %v124 = vunpack.c.l.b16 %v86
    %v125 = vunpack.c.l.b16 %v87
    %v126 = vunpack.c.l.b16 %v88
    %v127 = vunpack.c.l.b16 %v89
    %v128 = vunpack.c.l.b16 %v90
    %v129 = vunpack.c.l.b16 %v91
    %v130 = vunpack.c.l.b16 %v92
    %v131 = vunpack.c.l.b16 %v93
    %v132 = vunpack.c.l.b16 %v94
    %v133 = vunpack.c.l.b16 %v95
    %v134 = vunpack.c.l.b16 %v96
    %v135 = vpack.c.b16 %v120, %v119
    %v136 = vpack.c.b16 %v122, %v121
    %v137 = vpack.c.b16 %v124, %v123
    %v138 = vpack.c.b16 %v126, %v125
    %v139 = vpack.c.b16 %v128, %v127
    %v140 = vpack.c.b16 %v130, %v129
    %v141 = vpack.c.b16 %v132, %v131
    %v142 = vpack.c.b16 %v134, %v133
    %151 = vmatprep.subr.bf16.mxu0 0
    %152 = vmatpush1.bf16.msra.mxu0 %v142
    %153 = vmatprep.subr.bf16.mxu0 0
    %154 = vmatpush1.bf16.msra.mxu0 %v141
    %155 = vmatprep.subr.bf16.mxu0 0
    %156 = vmatpush1.bf16.msra.mxu0 %v140
    %157 = vmatprep.subr.bf16.mxu0 0
    %158 = vmatpush1.bf16.msra.mxu0 %v139
    %159 = vmatprep.subr.bf16.mxu0 0
    %160 = vmatpush1.bf16.msra.mxu0 %v138
    %161 = vmatprep.subr.bf16.mxu0 0
    %162 = vmatpush1.bf16.msra.mxu0 %v137
    %163 = vmatprep.subr.bf16.mxu0 0
    %164 = vmatpush1.bf16.msra.mxu0 %v136
    %165 = vmatprep.subr.bf16.mxu0 0
    %166 = vmatpush1.bf16.msra.mxu0 %v135
    %167 = vmatprep.subr.bf16.mxu0 0
    %168 = vmatpush2.bf16.msra.mxu0 0
    %169 = vmatprep.subr.bf16.mxu0 0
    %170 = vmatpush2.bf16.msra.mxu0 0
    %171 = vmatprep.subr.bf16.mxu0 0
    %172 = vmatpush2.bf16.msra.mxu0 0
    %173 = vmatprep.subr.bf16.mxu0 0
    %174 = vmatpush2.bf16.msra.mxu0 0
    %175 = vmatprep.subr.bf16.mxu0 0
    %176 = vmatpush2.bf16.msra.mxu0 0
    %177 = vmatprep.subr.bf16.mxu0 0
    %178 = vmatpush2.bf16.msra.mxu0 0
    %179 = vmatprep.subr.bf16.mxu0 0
    %180 = vmatpush2.bf16.msra.mxu0 0
    %181 = vmatprep.subr.bf16.mxu0 0
    %182 = vmatpush2.bf16.msra.mxu0 0
    %183 = vmatprep.mubr.bf16.mxu0 0
    %184 = vmatmul.mubr.bf16.gmra.mxu0 %v101
    %v185 = vpop.f32.mrf.mxu0
    %v186 = vadd.f32 0.0, %v185
    %v187 = vpop.f32.mrf.mxu0
    %v188 = vpop.f32.mrf.mxu0
    %v189 = vadd.f32 0.0, %v188
    %v190 = vpop.f32.mrf.mxu0
    %191 = vdwg.mxu0
    %v192 = vld [vmem:[#allocation2] sm:$0xf]
    %v193 = vld [vmem:[#allocation2 + $0x4] sm:$0xf]
    %v194 = vpack.c.bf16 %v189, %v186
    %v195 = vld [vmem:[%s3] sm:$0x1]
    %v197 = vlaneseq
    %v198 = vshrl.u32 %v197, 7
    %v199 = vsub.s32 0, %v198
    %v200 = vrot.slane %v195, %v199
    %v204 = vunpack.c.l.b16 %v192
    %v205 = vunpack.c.l.b16 %v193
    %v206 = vpack.c.b16 %v205, %v204
    %vm207 = vcmask 130048
    %v209 = vsel %vm207, %v206, 0
    %211 = vmatprep.subr.bf16.mxu0 0
    %212 = vmatpush1.bf16.msra.mxu0 0
    %213 = vmatprep.subr.bf16.mxu0 0
    %214 = vmatpush1.bf16.msra.mxu0 0
    %215 = vmatprep.subr.bf16.mxu0 0
    %216 = vmatpush1.bf16.msra.mxu0 0
    %217 = vmatprep.subr.bf16.mxu0 0
    %218 = vmatpush1.bf16.msra.mxu0 0
    %219 = vmatprep.subr.bf16.mxu0 0
    %220 = vmatpush1.bf16.msra.mxu0 0
    %221 = vmatprep.subr.bf16.mxu0 0
    %222 = vmatpush1.bf16.msra.mxu0 0
    %223 = vmatprep.subr.bf16.mxu0 0
    %224 = vmatpush1.bf16.msra.mxu0 0
    %225 = vmatprep.subr.bf16.mxu0 0
    %226 = vmatpush1.bf16.msra.mxu0 %v194
    %227 = vmatprep.subr.bf16.mxu0 0
    %228 = vmatpush2.bf16.msra.mxu0 0
    %229 = vmatprep.subr.bf16.mxu0 0
    %230 = vmatpush2.bf16.msra.mxu0 0
    %231 = vmatprep.subr.bf16.mxu0 0
    %232 = vmatpush2.bf16.msra.mxu0 0
    %233 = vmatprep.subr.bf16.mxu0 0
    %234 = vmatpush2.bf16.msra.mxu0 0
    %235 = vmatprep.subr.bf16.mxu0 0
    %236 = vmatpush2.bf16.msra.mxu0 0
    %237 = vmatprep.subr.bf16.mxu0 0
    %238 = vmatpush2.bf16.msra.mxu0 0
    %239 = vmatprep.subr.bf16.mxu0 0
    %240 = vmatpush2.bf16.msra.mxu0 0
    %241 = vmatprep.subr.bf16.mxu0 0
    %242 = vmatpush2.bf16.msra.mxu0 0
    %243 = vmatprep.mubr.bf16.mxu0 0
    %244 = vmatmul.mubr.bf16.gmra.mxu0 %v209
    %v245 = vpop.f32.mrf.mxu0
    %v246 = vadd.f32 %v200, %v245
    %v247 = vpop.f32.mrf.mxu0
    %v248 = vpop.f32.mrf.mxu0
    %v249 = vadd.f32 %v200, %v248
    %v250 = vpop.f32.mrf.mxu0
    %251 = vdwg.mxu0
    %v252 = vmax.f32 %v246, 0.0
    %v253 = vmax.f32 %v249, 0.0
    %v254 = vpack.c.bf16 %v253, %v252
    %v255 = vld [vmem:[#allocation7] sm:$0xf]
    %v256 = vld [vmem:[#allocation7 + $0x4] sm:$0xf]
    %v257 = vld [vmem:[#allocation7 + $0x8] sm:$0xf]
    %v258 = vld [vmem:[#allocation7 + $0xc] sm:$0xf]
    %v259 = vld [vmem:[#allocation7 + $0x10] sm:$0xf]
    %v260 = vld [vmem:[#allocation7 + $0x14] sm:$0xf]
    %v261 = vld [vmem:[#allocation7 + $0x18] sm:$0xf]
    %v262 = vld [vmem:[#allocation7 + $0x1c] sm:$0xf]
    %v263 = vld [vmem:[#allocation7 + $0x20] sm:$0xf]
    %v264 = vld [vmem:[#allocation7 + $0x24] sm:$0xf]
    %v265 = vld [vmem:[#allocation7 + $0x28] sm:$0xf]
    %v266 = vld [vmem:[#allocation7 + $0x2c] sm:$0xf]
    %v267 = vld [vmem:[#allocation7 + $0x30] sm:$0xf]
    %v268 = vld [vmem:[#allocation7 + $0x34] sm:$0xf]
    %v269 = vld [vmem:[#allocation7 + $0x38] sm:$0xf]
    %v270 = vld [vmem:[#allocation7 + $0x3c] sm:$0xf]
    %v287 = vunpack.c.l.b16 %v255
    %v288 = vunpack.c.l.b16 %v256
    %v289 = vunpack.c.l.b16 %v257
    %v290 = vunpack.c.l.b16 %v258
    %v291 = vunpack.c.l.b16 %v259
    %v292 = vunpack.c.l.b16 %v260
    %v293 = vunpack.c.l.b16 %v261
    %v294 = vunpack.c.l.b16 %v262
    %v295 = vunpack.c.l.b16 %v263
    %v296 = vunpack.c.l.b16 %v264
    %v297 = vunpack.c.l.b16 %v265
    %v298 = vunpack.c.l.b16 %v266
    %v299 = vunpack.c.l.b16 %v267
    %v300 = vunpack.c.l.b16 %v268
    %v301 = vunpack.c.l.b16 %v269
    %v302 = vunpack.c.l.b16 %v270
    %v303 = vpack.c.b16 %v288, %v287
    %v304 = vpack.c.b16 %v290, %v289
    %v305 = vpack.c.b16 %v292, %v291
    %v306 = vpack.c.b16 %v294, %v293
    %v307 = vpack.c.b16 %v296, %v295
    %v308 = vpack.c.b16 %v298, %v297
    %v309 = vpack.c.b16 %v300, %v299
    %v310 = vpack.c.b16 %v302, %v301
    %319 = vmatprep.subr.bf16.mxu0 0
    %320 = vmatpush1.bf16.msra.mxu0 %v310
    %321 = vmatprep.subr.bf16.mxu0 0
    %322 = vmatpush1.bf16.msra.mxu0 %v309
    %323 = vmatprep.subr.bf16.mxu0 0
    %324 = vmatpush1.bf16.msra.mxu0 %v308
    %325 = vmatprep.subr.bf16.mxu0 0
    %326 = vmatpush1.bf16.msra.mxu0 %v307
    %327 = vmatprep.subr.bf16.mxu0 0
    %328 = vmatpush1.bf16.msra.mxu0 %v306
    %329 = vmatprep.subr.bf16.mxu0 0
    %330 = vmatpush1.bf16.msra.mxu0 %v305
    %331 = vmatprep.subr.bf16.mxu0 0
    %332 = vmatpush1.bf16.msra.mxu0 %v304
    %333 = vmatprep.subr.bf16.mxu0 0
    %334 = vmatpush1.bf16.msra.mxu0 %v303
    %335 = vmatprep.subr.bf16.mxu0 0
    %336 = vmatpush2.bf16.msra.mxu0 0
    %337 = vmatprep.subr.bf16.mxu0 0
    %338 = vmatpush2.bf16.msra.mxu0 0
    %339 = vmatprep.subr.bf16.mxu0 0
    %340 = vmatpush2.bf16.msra.mxu0 0
    %341 = vmatprep.subr.bf16.mxu0 0
    %342 = vmatpush2.bf16.msra.mxu0 0
    %343 = vmatprep.subr.bf16.mxu0 0
    %344 = vmatpush2.bf16.msra.mxu0 0
    %345 = vmatprep.subr.bf16.mxu0 0
    %346 = vmatpush2.bf16.msra.mxu0 0
    %347 = vmatprep.subr.bf16.mxu0 0
    %348 = vmatpush2.bf16.msra.mxu0 0
    %349 = vmatprep.subr.bf16.mxu0 0
    %350 = vmatpush2.bf16.msra.mxu0 0
    %351 = vmatprep.mubr.bf16.mxu0 0
    %352 = vmatmul.mubr.bf16.gmra.mxu0 %v254
    %v353 = vpop.f32.mrf.mxu0
    %v354 = vadd.f32 0.0, %v353
    %v355 = vpop.f32.mrf.mxu0
    %v356 = vpop.f32.mrf.mxu0
    %v357 = vadd.f32 0.0, %v356
    %v358 = vpop.f32.mrf.mxu0
    %359 = vdwg.mxu0
    %v360 = vpack.c.bf16 %v357, %v354
    %v361 = vld [vmem:[%s5] sm:$0x1]
    %v363 = vlaneseq
    %v364 = vshrl.u32 %v363, 7
    %v365 = vsub.s32 0, %v364
    %v366 = vrot.slane %v361, %v365
    %368 = vmatprep.subr.bf16.mxu0 0
    %369 = vmatpush1.bf16.msra.mxu0 0
    %370 = vmatprep.subr.bf16.mxu0 0
    %371 = vmatpush1.bf16.msra.mxu0 0
    %372 = vmatprep.subr.bf16.mxu0 0
    %373 = vmatpush1.bf16.msra.mxu0 0
    %374 = vmatprep.subr.bf16.mxu0 0
    %375 = vmatpush1.bf16.msra.mxu0 0
    %376 = vmatprep.subr.bf16.mxu0 0
    %377 = vmatpush1.bf16.msra.mxu0 0
    %378 = vmatprep.subr.bf16.mxu0 0
    %379 = vmatpush1.bf16.msra.mxu0 0
    %380 = vmatprep.subr.bf16.mxu0 0
    %381 = vmatpush1.bf16.msra.mxu0 0
    %382 = vmatprep.subr.bf16.mxu0 0
    %383 = vmatpush1.bf16.msra.mxu0 %v360
    %384 = vmatprep.subr.bf16.mxu0 0
    %385 = vmatpush2.bf16.msra.mxu0 0
    %386 = vmatprep.subr.bf16.mxu0 0
    %387 = vmatpush2.bf16.msra.mxu0 0
    %388 = vmatprep.subr.bf16.mxu0 0
    %389 = vmatpush2.bf16.msra.mxu0 0
    %390 = vmatprep.subr.bf16.mxu0 0
    %391 = vmatpush2.bf16.msra.mxu0 0
    %392 = vmatprep.subr.bf16.mxu0 0
    %393 = vmatpush2.bf16.msra.mxu0 0
    %394 = vmatprep.subr.bf16.mxu0 0
    %395 = vmatpush2.bf16.msra.mxu0 0
    %396 = vmatprep.subr.bf16.mxu0 0
    %397 = vmatpush2.bf16.msra.mxu0 0
    %398 = vmatprep.subr.bf16.mxu0 0
    %399 = vmatpush2.bf16.msra.mxu0 0
    %400 = vmatprep.mubr.bf16.mxu0 0
    %401 = vmatmul.mubr.bf16.gmra.mxu0 %v209
    %v402 = vpop.f32.mrf.mxu0
    %v403 = vadd.f32 %v366, %v402
    %v404 = vpop.f32.mrf.mxu0
    %v405 = vpop.f32.mrf.mxu0
    %v406 = vadd.f32 %v366, %v405
    %v407 = vpop.f32.mrf.mxu0
    %408 = vdwg.mxu0
    %v409 = vlaneseq
    %v410 = vand.u32 %v409, 127
    %vm411 = vcmp.lt.s32.totalorder %v410, 4
    %v412 = vsel %vm411, %v403, -inf
    %v413 = vsel %vm411, %v406, -inf
    %414 = vmax.xlane.f32.xlu0 %v412
    %v415 = vpop.xlane.xlu0 %414
    %416 = vmax.xlane.f32.xlu0 %v413
    %v417 = vpop.xlane.xlu0 %416
    %v418 = vsub.f32 %v412, %v415
    %v419 = vsub.f32 %v413, %v417
    %v420 = vmul.f32 %v418, 1.442695
    %v421 = vpow.pop %v420
    %v422 = vmul.f32 %v419, 1.442695
    %v423 = vpow.pop %v422
    %424 = vadd.xlane.f32.xlu0 %v421
    %v425 = vpop.xlane.xlu0 %424
    %426 = vadd.xlane.f32.xlu0 %v423
    %v427 = vpop.xlane.xlu0 %426
    %v428 = vlog2.pop %v425
    %v429 = vmul.f32 %v428, 0.6931472
    %v430 = vlog2.pop %v427
    %v431 = vmul.f32 %v430, 0.6931472
    %v432 = vadd.f32 %v415, %v429
    %v433 = vadd.f32 %v417, %v431
    %v434 = vsub.f32 %v403, %v432
    %v435 = vsub.f32 %v406, %v433
    %436 = vst [vmem:[%s6] sm:$0xff] %v434
    %437 = vst [vmem:[%s6 + $0x8] sm:$0xff] %v435
    // Predicated region
    $region42: #{gcn_forward_padded.1} parent=1 // pred_check
      _
    $region43: #{gcn_forward_padded.1} parent=1 // pred_check_branch
      %439 = sbr.rel (0) target = $region45
    $region44: #{gcn_forward_padded.1} parent=1 // pred_region
      _
    $region45: #{gcn_forward_padded.1} parent=1 // pred_fallthru
      _
    // Predicated region
    $region46: #{gcn_forward_padded.1} parent=1 // pred_check
      _
    $region47: #{gcn_forward_padded.1} parent=1 // pred_check_branch
      %441 = sbr.rel (0) target = $region49
    $region48: #{gcn_forward_padded.1} parent=1 // pred_region
      _
    $region49: #{gcn_forward_padded.1} parent=1 // pred_fallthru
      _
    %442 = vsyncpa [#allocation3], 1
    %443 = vsyncpa [#allocation5], 1
    %444 = vsyncpa [#allocation8], 1

</llo_original>
